<compile_context>
chip_gen: v7x
topology: tpu7x:2x2x1
jax: 0.10.0
libtpu: 0.0.40
codegen_flags: <defaults>
</compile_context>

<pallas_src>
import functools
import math
from typing import NamedTuple

import jax
import jax.numpy as jnp
from jax.experimental import pallas as pl
from jax.experimental.pallas import tpu as pltpu


def _round_up(x, m):
    return (x + m - 1) // m * m


def _erf_f32(x):
    # Abramowitz & Stegun 7.1.26 rational approximation, |error| <= 1.5e-7.
    # Uses only abs/exp/mul/add/div/select so it is guaranteed to lower in Mosaic,
    # and is numerically indistinguishable from exact erf at float32 precision.
    p = 0.3275911
    a1, a2, a3, a4, a5 = 0.254829592, -0.284496736, 1.421413741, -1.453152027, 1.061405429
    ax = jnp.abs(x)
    t = 1.0 / (1.0 + p * ax)
    poly = t * (a1 + t * (a2 + t * (a3 + t * (a4 + t * a5))))
    y = 1.0 - poly * jnp.exp(-ax * ax)
    return jnp.where(x < 0.0, -y, y)


def _timestep_embedding_kernel(t_ref, freq_ref, phase_ref, w1_ref, b1_ref,
                               w2_ref, b2_ref, out_ref):
    # t: (TB, 1) f32; freq/phase: (1, dim) f32.
    # Single sin with precomputed phase row replaces the old sin+cos+select.
    emb = jnp.sin(t_ref[...] * freq_ref[...] + phase_ref[...])          # (TB, dim) f32

    # Linear 1: bf16 operands on the MXU, f32 accumulate, f32 bias add.
    h = jnp.dot(emb.astype(w1_ref.dtype), w1_ref[...],
                preferred_element_type=jnp.float32) + b1_ref[...]

    # Exact (erf-based) GELU in f32, matching torch.nn.GELU() default.
    h = 0.5 * h * (1.0 + _erf_f32(h * (1.0 / math.sqrt(2.0))))

    # Linear 2: bf16 operands, f32 accumulate, f32 bias add.
    out_ref[...] = (jnp.dot(h.astype(w2_ref.dtype), w2_ref[...],
                            preferred_element_type=jnp.float32)
                    + b2_ref[...]).astype(out_ref.dtype)


class TimestepEmbeddingParams(NamedTuple):
    freq: jax.Array    # (1, dim)        f32
    phase: jax.Array   # (1, dim)        f32
    w1: jax.Array      # (dim, hidden)   weight_dtype
    b1: jax.Array      # (1, hidden)     f32
    w2: jax.Array      # (hidden, out_p) weight_dtype
    b2: jax.Array      # (1, out_p)      f32
    out_dim: int       # un-padded output width (4*dim)


def prepare_timestep_embedding_params(div_term, w1, b1, w2, b2,
                                      weight_dtype=jnp.bfloat16):
    """One-time prep (hoisted out of the hot path): weight casts, freq/phase rows,
    bias reshapes, and padding of the output width to a multiple of 128."""
    half = div_term.shape[0]
    dim = 2 * half
    hidden = w1.shape[1]
    out_dim = w2.shape[1]
    assert w1.shape == (dim, hidden) and w2.shape[0] == hidden

    freq = jnp.concatenate([div_term, div_term]).astype(jnp.float32).reshape(1, dim)
    phase = jnp.concatenate(
        [jnp.zeros((half,), jnp.float32),
         jnp.full((half,), math.pi / 2.0, jnp.float32)]).reshape(1, dim)

    out_p = _round_up(out_dim, 128)   # lane-dense output stores
    w2f = w2.astype(jnp.float32)
    b2f = b2.astype(jnp.float32).reshape(1, out_dim)
    if out_p != out_dim:
        w2f = jnp.pad(w2f, ((0, 0), (0, out_p - out_dim)))
        b2f = jnp.pad(b2f, ((0, 0), (0, out_p - out_dim)))

    return TimestepEmbeddingParams(
        freq=freq,
        phase=phase,
        w1=w1.astype(weight_dtype),
        b1=b1.astype(jnp.float32).reshape(1, hidden),
        w2=w2f.astype(weight_dtype),
        b2=b2f,
        out_dim=out_dim,
    )


def _vmem_limit_bytes(dim, hidden, tn, tb, n_col, w_itemsize):
    resident = (2 * dim * 4                        # freq + phase (single-buffered)
                + dim * hidden * w_itemsize        # W1 (single-buffered)
                + hidden * 4)                      # b1 (single-buffered)
    w2_bufs = 1 if n_col == 1 else 2
    resident += w2_bufs * (hidden * tn * w_itemsize + tn * 4)
    per_step = 2 * tb * 4 + 2 * tb * tn * 4        # double-buffered t + output tiles
    scratch = tb * dim * 4 + 3 * tb * hidden * 4   # emb + h intermediates (f32/bf16)
    est = resident + per_step + scratch
    return int(min(64 << 20, max(16 << 20, 2 * est)))


def timestep_embedding(timesteps, params: TimestepEmbeddingParams,
                       *, block_b=256, out_col_blocks=1):
    """timesteps: (B,) int/float -> (B, 4*dim) float32."""
    B = timesteps.shape[0]
    dim = params.freq.shape[1]
    hidden = params.w1.shape[1]
    out_p = params.w2.shape[1]
    assert out_p % 128 == 0, "padded output width must be a multiple of 128"

    # Optional output-column split (gives v7x's second TensorCore work when the
    # batch grid collapses to one step).  Fall back to 1 if it does not tile cleanly.
    n_col = int(out_col_blocks)
    if n_col < 1 or out_p % n_col != 0 or (out_p // n_col) % 128 != 0:
        n_col = 1
    tn = out_p // n_col

    tb = B if B <= block_b else block_b
    grid = (pl.cdiv(B, tb), n_col)

    t2d = timesteps.astype(jnp.float32).reshape(B, 1)

    def resident(shape):
        # Constant block index across the whole grid -> single buffer is enough.
        return pl.BlockSpec(shape, lambda i, j: (0, 0), pipeline_mode=pl.Buffered(1))

    if n_col == 1:
        w2_spec = resident((hidden, tn))
        b2_spec = resident((1, tn))
    else:
        w2_spec = pl.BlockSpec((hidden, tn), lambda i, j: (0, j))
        b2_spec = pl.BlockSpec((1, tn), lambda i, j: (0, j))

    vmem_limit = _vmem_limit_bytes(dim, hidden, tn, tb, n_col,
                                   jnp.dtype(params.w1.dtype).itemsize)

    out = pl.pallas_call(
        _timestep_embedding_kernel,
        out_shape=jax.ShapeDtypeStruct((B, out_p), jnp.float32),
        grid=grid,
        in_specs=[
            pl.BlockSpec((tb, 1), lambda i, j: (i, 0)),   # timesteps: blocked over rows
            resident((1, dim)),                            # freq
            resident((1, dim)),                            # phase
            resident((dim, hidden)),                       # W1 (bf16)
            resident((1, hidden)),                         # b1
            w2_spec,                                       # W2 (column-blocked if n_col > 1)
            b2_spec,                                       # b2
        ],
        out_specs=pl.BlockSpec((tb, tn), lambda i, j: (i, j)),
        compiler_params=pltpu.CompilerParams(
            dimension_semantics=("parallel", "parallel"),
            vmem_limit_bytes=vmem_limit),
    )(t2d, params.freq, params.phase, params.w1, params.b1, params.w2, params.b2)

    # NOTE: if B % tb != 0 the padded tail rows run on garbage timesteps; the masked
    # writeback keeps the stored output correct -- do not "fix" this.
    return out[:, :params.out_dim] if params.out_dim != out_p else out


def _reference(timesteps, div_term, w1, b1, w2, b2, weight_dtype=jnp.float32):
    """Pure-JAX reference (mirrors the torch module). With weight_dtype=bf16 it mirrors
    the kernel's matmul numerics."""
    t = timesteps.astype(jnp.float32)[:, None]
    arg = t * div_term[None, :]
    emb = jnp.concatenate([jnp.sin(arg), jnp.cos(arg)], axis=-1)
    h = jnp.dot(emb.astype(weight_dtype), w1.astype(weight_dtype),
                preferred_element_type=jnp.float32) + b1
    h = 0.5 * h * (1.0 + jax.lax.erf(h / jnp.sqrt(2.0)))
    return jnp.dot(h.astype(weight_dtype), w2.astype(weight_dtype),
                   preferred_element_type=jnp.float32) + b2


if __name__ == "__main__":
    # Small shapes consistent with the module: dim=64, batch=8.
    dim = 64
    batch = 8

    key = jax.random.PRNGKey(0)
    k_t, k_w1, k_b1, k_w2, k_b2 = jax.random.split(key, 5)

    # Buffer from __init__: div_term = exp(arange(0, dim, 2) * -(log(10000)/dim))
    div_term = jnp.exp(
        jnp.arange(0.0, dim, 2.0, dtype=jnp.float32) * (-(math.log(10000.0) / dim))
    )

    # Synthetic parameters: nn.Linear(dim, 4*dim), nn.Linear(4*dim, 4*dim),
    # stored as (in_features, out_features) so the kernel computes x @ W + b.
    w1 = jax.random.normal(k_w1, (dim, dim * 4), dtype=jnp.float32) * (1.0 / math.sqrt(dim))
    b1 = jax.random.normal(k_b1, (dim * 4,), dtype=jnp.float32) * 0.01
    w2 = jax.random.normal(k_w2, (dim * 4, dim * 4), dtype=jnp.float32) * (1.0 / math.sqrt(dim * 4))
    b2 = jax.random.normal(k_b2, (dim * 4,), dtype=jnp.float32) * 0.01

    # Integer timesteps, shape (batch,)
    timesteps = jax.random.randint(k_t, (batch,), 0, 1000)

    # One-time prep (bf16 weight casts, freq/phase rows, bias reshapes) -- hoisted.
    params = prepare_timestep_embedding_params(div_term, w1, b1, w2, b2)

    out = timestep_embedding(timesteps, params)
    out = jax.block_until_ready(out)
    assert out.shape == (batch, dim * 4), out.shape

    # Primary check: reference with the same bf16-weight / f32-accumulate numerics.
    ref_bf16 = _reference(timesteps, div_term, w1, b1, w2, b2, weight_dtype=jnp.bfloat16)
    assert jnp.allclose(out, ref_bf16, atol=2e-2, rtol=2e-2), \
        float(jnp.max(jnp.abs(out - ref_bf16)))

    # Sanity check vs. the full-f32 PyTorch-equivalent math (bf16 weights are an
    # intentional precision tradeoff per the perf review).
    ref_f32 = _reference(timesteps, div_term, w1, b1, w2, b2, weight_dtype=jnp.float32)
    assert jnp.allclose(out, ref_f32, atol=1e-1, rtol=1e-1), \
        float(jnp.max(jnp.abs(out - ref_f32)))

    # Exercise the v7x two-column-split path; it must match the unsplit result.
    out_split = timestep_embedding(timesteps, params, out_col_blocks=2)
    out_split = jax.block_until_ready(out_split)
    assert out_split.shape == out.shape
    assert jnp.allclose(out, out_split, atol=1e-3, rtol=1e-3), \
        float(jnp.max(jnp.abs(out - out_split)))

    print("KERNEL_OK")
</pallas_src>

<mosaic_0001>
module attributes {stable_mosaic.version = 11 : i64} {
  func.func @_timestep_embedding_kernel(%arg0: i32, %arg1: i32, %arg2: memref<8x1xf32, #tpu.memory_space<vmem>>, %arg3: memref<1x64xf32, #tpu.memory_space<vmem>>, %arg4: memref<1x64xf32, #tpu.memory_space<vmem>>, %arg5: memref<64x256xbf16, #tpu.memory_space<vmem>>, %arg6: memref<1x256xf32, #tpu.memory_space<vmem>>, %arg7: memref<256x256xbf16, #tpu.memory_space<vmem>>, %arg8: memref<1x256xf32, #tpu.memory_space<vmem>>, %arg9: memref<8x256xf32, #tpu.memory_space<vmem>>) attributes {dimension_semantics = [#tpu.dimension_semantics<parallel>, #tpu.dimension_semantics<parallel>], iteration_bounds = array<i64: 1, 1>, scalar_prefetch = 0 : i64, scratch_operands = 0 : i64, tpu.core_type = #tpu.core_type<tc>, window_params = [{transform_indices = @transform_0, window_bounds = array<i64: 8, 1>}, {pipeline_mode = #tpu.pipeline_mode<synchronous>, transform_indices = @transform_1, window_bounds = array<i64: 1, 64>}, {pipeline_mode = #tpu.pipeline_mode<synchronous>, transform_indices = @transform_2, window_bounds = array<i64: 1, 64>}, {pipeline_mode = #tpu.pipeline_mode<synchronous>, transform_indices = @transform_3, window_bounds = array<i64: 64, 256>}, {pipeline_mode = #tpu.pipeline_mode<synchronous>, transform_indices = @transform_4, window_bounds = array<i64: 1, 256>}, {pipeline_mode = #tpu.pipeline_mode<synchronous>, transform_indices = @transform_5, window_bounds = array<i64: 256, 256>}, {pipeline_mode = #tpu.pipeline_mode<synchronous>, transform_indices = @transform_6, window_bounds = array<i64: 1, 256>}, {transform_indices = @transform_7, window_bounds = array<i64: 8, 256>}]} {
    %c0 = arith.constant 0 : index
    %c0_0 = arith.constant 0 : index
    %0 = vector.load %arg2[%c0, %c0_0] : memref<8x1xf32, #tpu.memory_space<vmem>>, vector<8x1xf32>
    %c0_1 = arith.constant 0 : index
    %c0_2 = arith.constant 0 : index
    %1 = vector.load %arg3[%c0_1, %c0_2] : memref<1x64xf32, #tpu.memory_space<vmem>>, vector<1x64xf32>
    %2 = vector.broadcast %0 : vector<8x1xf32> to vector<8x64xf32>
    %3 = vector.broadcast %1 : vector<1x64xf32> to vector<8x64xf32>
    %4 = arith.mulf %2, %3 : vector<8x64xf32>
    %c0_3 = arith.constant 0 : index
    %c0_4 = arith.constant 0 : index
    %5 = vector.load %arg4[%c0_3, %c0_4] : memref<1x64xf32, #tpu.memory_space<vmem>>, vector<1x64xf32>
    %6 = vector.broadcast %5 : vector<1x64xf32> to vector<8x64xf32>
    %7 = arith.addf %4, %6 : vector<8x64xf32>
    %8 = math.sin %7 : vector<8x64xf32>
    %9 = arith.truncf %8 : vector<8x64xf32> to vector<8x64xbf16>
    %c0_5 = arith.constant 0 : index
    %c0_6 = arith.constant 0 : index
    %10 = vector.load %arg5[%c0_5, %c0_6] : memref<64x256xbf16, #tpu.memory_space<vmem>>, vector<64x256xbf16>
    %cst = arith.constant dense<0.000000e+00> : vector<8x256xf32>
    %11 = tpu.matmul %9, %10, %cst {dimension_numbers = #tpu.dot_dimension_numbers<[1], [0], [0], [1], [0, 0, 1, 1], [], []>} : vector<8x64xbf16>, vector<64x256xbf16>, vector<8x256xf32> -> vector<8x256xf32>
    %c0_7 = arith.constant 0 : index
    %c0_8 = arith.constant 0 : index
    %12 = vector.load %arg6[%c0_7, %c0_8] : memref<1x256xf32, #tpu.memory_space<vmem>>, vector<1x256xf32>
    %13 = vector.broadcast %12 : vector<1x256xf32> to vector<8x256xf32>
    %14 = arith.addf %11, %13 : vector<8x256xf32>
    %cst_9 = arith.constant 5.000000e-01 : f32
    %15 = vector.broadcast %cst_9 : f32 to vector<8x256xf32>
    %16 = arith.mulf %15, %14 : vector<8x256xf32>
    %cst_10 = arith.constant 0.707106769 : f32
    %17 = vector.broadcast %cst_10 : f32 to vector<8x256xf32>
    %18 = arith.mulf %14, %17 : vector<8x256xf32>
    %19 = math.absf %18 : vector<8x256xf32>
    %cst_11 = arith.constant 0.327591091 : f32
    %20 = vector.broadcast %cst_11 : f32 to vector<8x256xf32>
    %21 = arith.mulf %20, %19 : vector<8x256xf32>
    %cst_12 = arith.constant 1.000000e+00 : f32
    %22 = vector.broadcast %cst_12 : f32 to vector<8x256xf32>
    %23 = arith.addf %22, %21 : vector<8x256xf32>
    %cst_13 = arith.constant 1.000000e+00 : f32
    %24 = vector.broadcast %cst_13 : f32 to vector<8x256xf32>
    %25 = arith.divf %24, %23 : vector<8x256xf32>
    %cst_14 = arith.constant 1.06140542 : f32
    %26 = vector.broadcast %cst_14 : f32 to vector<8x256xf32>
    %27 = arith.mulf %25, %26 : vector<8x256xf32>
    %cst_15 = arith.constant -1.45315206 : f32
    %28 = vector.broadcast %cst_15 : f32 to vector<8x256xf32>
    %29 = arith.addf %28, %27 : vector<8x256xf32>
    %30 = arith.mulf %25, %29 : vector<8x256xf32>
    %cst_16 = arith.constant 1.42141378 : f32
    %31 = vector.broadcast %cst_16 : f32 to vector<8x256xf32>
    %32 = arith.addf %31, %30 : vector<8x256xf32>
    %33 = arith.mulf %25, %32 : vector<8x256xf32>
    %cst_17 = arith.constant -0.284496725 : f32
    %34 = vector.broadcast %cst_17 : f32 to vector<8x256xf32>
    %35 = arith.addf %34, %33 : vector<8x256xf32>
    %36 = arith.mulf %25, %35 : vector<8x256xf32>
    %cst_18 = arith.constant 0.254829586 : f32
    %37 = vector.broadcast %cst_18 : f32 to vector<8x256xf32>
    %38 = arith.addf %37, %36 : vector<8x256xf32>
    %39 = arith.mulf %25, %38 : vector<8x256xf32>
    %cst_19 = arith.constant 0.000000e+00 : f32
    %40 = vector.broadcast %cst_19 : f32 to vector<8x256xf32>
    %41 = arith.subf %40, %19 : vector<8x256xf32>
    %42 = arith.mulf %41, %19 : vector<8x256xf32>
    %43 = math.exp %42 : vector<8x256xf32>
    %44 = arith.mulf %39, %43 : vector<8x256xf32>
    %cst_20 = arith.constant 1.000000e+00 : f32
    %45 = vector.broadcast %cst_20 : f32 to vector<8x256xf32>
    %46 = arith.subf %45, %44 : vector<8x256xf32>
    %cst_21 = arith.constant 0.000000e+00 : f32
    %47 = vector.broadcast %cst_21 : f32 to vector<8x256xf32>
    %48 = arith.cmpf olt, %18, %47 : vector<8x256xf32>
    %cst_22 = arith.constant 0.000000e+00 : f32
    %49 = vector.broadcast %cst_22 : f32 to vector<8x256xf32>
    %50 = arith.subf %49, %46 : vector<8x256xf32>
    %51 = arith.select %48, %50, %46 : vector<8x256xi1>, vector<8x256xf32>
    %cst_23 = arith.constant 1.000000e+00 : f32
    %52 = vector.broadcast %cst_23 : f32 to vector<8x256xf32>
    %53 = arith.addf %52, %51 : vector<8x256xf32>
    %54 = arith.mulf %16, %53 : vector<8x256xf32>
    %55 = arith.truncf %54 : vector<8x256xf32> to vector<8x256xbf16>
    %c0_24 = arith.constant 0 : index
    %c0_25 = arith.constant 0 : index
    %56 = vector.load %arg7[%c0_24, %c0_25] : memref<256x256xbf16, #tpu.memory_space<vmem>>, vector<256x256xbf16>
    %cst_26 = arith.constant dense<0.000000e+00> : vector<8x256xf32>
    %57 = tpu.matmul %55, %56, %cst_26 {dimension_numbers = #tpu.dot_dimension_numbers<[1], [0], [0], [1], [0, 0, 1, 1], [], []>} : vector<8x256xbf16>, vector<256x256xbf16>, vector<8x256xf32> -> vector<8x256xf32>
    %c0_27 = arith.constant 0 : index
    %c0_28 = arith.constant 0 : index
    %58 = vector.load %arg8[%c0_27, %c0_28] : memref<1x256xf32, #tpu.memory_space<vmem>>, vector<1x256xf32>
    %59 = vector.broadcast %58 : vector<1x256xf32> to vector<8x256xf32>
    %60 = arith.addf %57, %59 : vector<8x256xf32>
    %c0_29 = arith.constant 0 : index
    %c0_30 = arith.constant 0 : index
    %61 = vector.load %arg9[%c0_29, %c0_30] : memref<8x256xf32, #tpu.memory_space<vmem>>, vector<8x256xf32>
    tpu.vector_store %arg9[%c0_29, %c0_30], %60 {strides = array<i32>} : memref<8x256xf32, #tpu.memory_space<vmem>>, vector<8x256xf32>,
    return
  }
  func.func @transform_0(%arg0: i32, %arg1: i32) -> (i32, i32) {
    %c0_i32 = arith.constant 0 : i32
    %c0_i32_0 = arith.constant 0 : i32
    return %arg0, %c0_i32 : i32, i32
  }
  func.func @transform_1(%arg0: i32, %arg1: i32) -> (i32, i32) {
    %c0_i32 = arith.constant 0 : i32
    %c0_i32_0 = arith.constant 0 : i32
    %c0_i32_1 = arith.constant 0 : i32
    return %c0_i32, %c0_i32_0 : i32, i32
  }
  func.func @transform_2(%arg0: i32, %arg1: i32) -> (i32, i32) {
    %c0_i32 = arith.constant 0 : i32
    %c0_i32_0 = arith.constant 0 : i32
    %c0_i32_1 = arith.constant 0 : i32
    return %c0_i32, %c0_i32_0 : i32, i32
  }
  func.func @transform_3(%arg0: i32, %arg1: i32) -> (i32, i32) {
    %c0_i32 = arith.constant 0 : i32
    %c0_i32_0 = arith.constant 0 : i32
    %c0_i32_1 = arith.constant 0 : i32
    return %c0_i32, %c0_i32_0 : i32, i32
  }
  func.func @transform_4(%arg0: i32, %arg1: i32) -> (i32, i32) {
    %c0_i32 = arith.constant 0 : i32
    %c0_i32_0 = arith.constant 0 : i32
    %c0_i32_1 = arith.constant 0 : i32
    return %c0_i32, %c0_i32_0 : i32, i32
  }
  func.func @transform_5(%arg0: i32, %arg1: i32) -> (i32, i32) {
    %c0_i32 = arith.constant 0 : i32
    %c0_i32_0 = arith.constant 0 : i32
    %c0_i32_1 = arith.constant 0 : i32
    return %c0_i32, %c0_i32_0 : i32, i32
  }
  func.func @transform_6(%arg0: i32, %arg1: i32) -> (i32, i32) {
    %c0_i32 = arith.constant 0 : i32
    %c0_i32_0 = arith.constant 0 : i32
    %c0_i32_1 = arith.constant 0 : i32
    return %c0_i32, %c0_i32_0 : i32, i32
  }
  func.func @transform_7(%arg0: i32, %arg1: i32) -> (i32, i32) {
    %c0_i32 = arith.constant 0 : i32
    return %arg0, %arg1 : i32, i32
  }
}

</mosaic_0001>

<llo_original>
// kernel: tpu_custom_call.1
$region0: #{tpu_custom_call.1}
  #allocation0 [shape = 'u32[]', space=smem, size = 0x4, offset = 0x4, fixed_abs, tag = 'smem constant byte address 0x4 - core index']
  #allocation1 [shape = 'u32[144,128]{1,0:T(1,128)}', space=vmem, size = 0x12000, scoped, tag = 'internal scratch']
  %s0 = inlined_call_operand.vmem [shape: f32[8,1], index: 0, kind: input, shape index: {}]
  %s1 = inlined_call_operand.vmem [shape: f32[1,64], index: 1, kind: input, shape index: {}]
  %s2 = inlined_call_operand.vmem [shape: f32[1,64], index: 2, kind: input, shape index: {}]
  %s3 = inlined_call_operand.hbm [shape: bf16[64,256], index: 3, kind: input, shape index: {}]
  %s4 = inlined_call_operand.vmem [shape: f32[1,256], index: 4, kind: input, shape index: {}]
  %s5 = inlined_call_operand.hbm [shape: bf16[256,256], index: 5, kind: input, shape index: {}]
  %s6 = inlined_call_operand.vmem [shape: f32[1,256], index: 6, kind: input, shape index: {}]
  %s7 = inlined_call_operand.hbm [shape: f32[8,256], index: 7, kind: output, shape index: {}]
  %s8 = sld [smem:[#allocation0]]
  $region46: #{tpu_custom_call.1} parent=0
    _
  %s10 = ssub.s32 1, %s8
  %s11 = scalar_select 0, %s10, %s8
  $region1: #{tpu_custom_call.1} parent=0
    #allocation2 [shape = 'u8[32768]{0}', space=vmem, size = 0x8000, scoped, tag = 'input window, operand 3, single buffered']
    #allocation3 [shape = 's32[1]{0}', space=sflag, size = 0x4, scoped, tag = 'scoped memory for tpu_custom_call.1']
    #allocation4 [shape = 's32[1]{0}', space=sflag, size = 0x4, scoped, tag = 'scoped memory for tpu_custom_call.1']
    #allocation5 [shape = 'u8[131072]{0}', space=vmem, size = 0x20000, scoped, tag = 'input window, operand 5, single buffered']
    #allocation6 [shape = 's32[1]{0}', space=sflag, size = 0x4, scoped, tag = 'scoped memory for tpu_custom_call.1']
    #allocation7 [shape = 'u8[8192]{0}', space=vmem, size = 0x2000, scoped, tag = 'output window, operand 0, single buffered']
    %12 = vsyncpa [#allocation3], 0
    %13 = vsyncpa [#allocation6], 0
    %14 = vsyncpa [#allocation4], 0
    // Predicated region
    $region2: #{tpu_custom_call.1} parent=1 // pred_check
      _
    $region3: #{tpu_custom_call.1} parent=1 // pred_check_branch
      %16 = sbr.rel (0) target = $region5
    $region4: #{tpu_custom_call.1} parent=1 // pred_region
      _
    $region5: #{tpu_custom_call.1} parent=1 // pred_fallthru
      _
    // Predicated region
    $region6: #{tpu_custom_call.1} parent=1 // pred_check
      _
    $region7: #{tpu_custom_call.1} parent=1 // pred_check_branch
      %18 = sbr.rel (0) target = $region9
    $region8: #{tpu_custom_call.1} parent=1 // pred_region
      _
    $region9: #{tpu_custom_call.1} parent=1 // pred_fallthru
      _
    // Predicated region
    $region10: #{tpu_custom_call.1} parent=1 // pred_check
      _
    $region11: #{tpu_custom_call.1} parent=1 // pred_check_branch
      %20 = sbr.rel (0) target = $region13
    $region12: #{tpu_custom_call.1} parent=1 // pred_region
      _
    $region13: #{tpu_custom_call.1} parent=1 // pred_fallthru
      _
    // Predicated region
    $region14: #{tpu_custom_call.1} parent=1 // pred_check
      _
    $region15: #{tpu_custom_call.1} parent=1 // pred_check_branch
      %22 = sbr.rel (0) target = $region17
    $region16: #{tpu_custom_call.1} parent=1 // pred_region
      %s24 = ssub.s32 1024, 1024
      %25 = vsyncadd [#allocation3], %s24
      %s26 = sshll.u32 [#allocation2], 4
      %s27 = int_to_ptr.vmem [resolvable:$true] %s26
      %32 = dma.hbm_to_vmem [thread:$0]  %s3, 1024, %s27, [#allocation3], 128, 128, 8
    $region17: #{tpu_custom_call.1} parent=1 // pred_fallthru
      _
    // Predicated region
    $region18: #{tpu_custom_call.1} parent=1 // pred_check
      _
    $region19: #{tpu_custom_call.1} parent=1 // pred_check_branch
      %34 = sbr.rel (0) target = $region21
    $region20: #{tpu_custom_call.1} parent=1 // pred_region
      _
    $region21: #{tpu_custom_call.1} parent=1 // pred_fallthru
      _
    // Predicated region
    $region22: #{tpu_custom_call.1} parent=1 // pred_check
      _
    $region23: #{tpu_custom_call.1} parent=1 // pred_check_branch
      %36 = sbr.rel (0) target = $region25
    $region24: #{tpu_custom_call.1} parent=1 // pred_region
      %s38 = ssub.s32 4096, 4096
      %39 = vsyncadd [#allocation6], %s38
      %s40 = sshll.u32 [#allocation5], 4
      %s41 = int_to_ptr.vmem [resolvable:$true] %s40
      %46 = dma.hbm_to_vmem [thread:$0]  %s5, 4096, %s41, [#allocation6], 128, 128, 8
    $region25: #{tpu_custom_call.1} parent=1 // pred_fallthru
      _
    // Predicated region
    $region26: #{tpu_custom_call.1} parent=1 // pred_check
      _
    $region27: #{tpu_custom_call.1} parent=1 // pred_check_branch
      %48 = sbr.rel (0) target = $region29
    $region28: #{tpu_custom_call.1} parent=1 // pred_region
      _
    $region29: #{tpu_custom_call.1} parent=1 // pred_fallthru
      _
    // Predicated region
    $region30: #{tpu_custom_call.1} parent=1 // pred_check
      _
    $region31: #{tpu_custom_call.1} parent=1 // pred_check_branch
      %50 = sbr.rel (0) target = $region33
    $region32: #{tpu_custom_call.1} parent=1 // pred_region
      %51 = dma.done [#allocation3], 1024
    $region33: #{tpu_custom_call.1} parent=1 // pred_fallthru
      _
    // Predicated region
    $region34: #{tpu_custom_call.1} parent=1 // pred_check
      _
    $region35: #{tpu_custom_call.1} parent=1 // pred_check_branch
      %53 = sbr.rel (0) target = $region37
    $region36: #{tpu_custom_call.1} parent=1 // pred_region
      %54 = dma.done [#allocation6], 4096
    $region37: #{tpu_custom_call.1} parent=1 // pred_fallthru
      _
    %v56 = vld [vmem:[%s0] sm:$0xff]
    %v57 = vld [vmem:[%s1] sm:$0x1]
    %59 = vset.pattern.permute.xlu0 0
    %60 = vperm.xlu0 %59, %v56
    %v61 = vpop.permute.xlu0 %60
    %v64 = vlaneseq
    %v65 = vshrl.u32 %v64, 7
    %v66 = vsub.s32 0, %v65
    %v67 = vrot.slane %v57, %v66
    %v69 = vmul.f32 %v61, %v67
    %v70 = vld [vmem:[%s2] sm:$0x1]
    %v72 = vlaneseq
    %v73 = vshrl.u32 %v72, 7
    %v74 = vsub.s32 0, %v73
    %v75 = vrot.slane %v70, %v74
    %v77 = vadd.f32 %v69, %v75
    %v78 = vand.u32 2147483647, %v77
    %vm79 = vcmp.le.f32.partialorder %v78, 0.7853982
    %vm80 = vcmp.lt.s32.totalorder %v77, 0
    %v81 = vand.u32 %v77, 2139095040
    %v82 = vshrl.u32 %v81, 23
    %v83 = vsub.s32 %v82, 127
    %v84 = vand.u32 2147483647, %v77
    %v85 = vand.u32 %v84, 8388607
    %v86 = vor.u32 %v85, 8388608
    %v87 = vsub.s32 0, %v86
    %v88 = vadd.s32 %v83, 1
    %vm89 = vcmp.gt.s32.totalorder %v88, 0
    %v90 = vsel %vm89, %v88, 0
    %v91 = vshrl.u32 %v90, 5
    %v92 = vand.u32 %v90, 31
    %v93 = vsub.s32 32, %v92
    %v94 = vshrl.u32 683565275, %v93
    %v95 = vshll.u32 683565275, %v92
    %v96 = vshrl.u32 2475754826, %v93
    %v97 = vor.u32 %v95, %v96
    %v98 = vshll.u32 2475754826, %v92
    %v99 = vshrl.u32 2131351028, %v93
    %v100 = vor.u32 %v98, %v99
    %v101 = vshll.u32 2131351028, %v92
    %v102 = vshrl.u32 2102212464, %v93
    %v103 = vor.u32 %v101, %v102
    %v104 = vshll.u32 2102212464, %v92
    %v105 = vshrl.u32 920167782, %v93
    %v106 = vor.u32 %v104, %v105
    %v107 = vshll.u32 920167782, %v92
    %v108 = vshrl.u32 1326507024, %v93
    %v109 = vor.u32 %v107, %v108
    %vm110 = vcmp.lt.s32.totalorder %v91, 1
    %vm111 = vcmp.lt.s32.totalorder %v91, 2
    %vm112 = vcmp.lt.s32.totalorder %v91, 3
    %vm113 = vcmp.lt.s32.totalorder %v91, 4
    %v114 = vsel %vm110, %v94, %v97
    %v115 = vsel %vm113, %v103, 2102212464
    %v116 = vsel %vm112, %v100, %v115
    %v117 = vsel %vm111, %v114, %v116
    %v118 = vsel %vm110, %v97, %v100
    %v119 = vsel %vm113, %v106, 920167782
    %v120 = vsel %vm112, %v103, %v119
    %v121 = vsel %vm111, %v118, %v120
    %v122 = vsel %vm110, %v100, %v103
    %v123 = vsel %vm113, %v109, 1326507024
    %v124 = vsel %vm112, %v106, %v123
    %v125 = vsel %vm111, %v122, %v124
    %v126 = vshll.u32 %v86, 8
    %v127 = vmul.u32.u64.compose %v126, %v125
    %v128 = vextract.low.u32 %v127
    %v129 = vextract.high.u32 %v127
    %v130 = vmul.u32.u64.compose %v126, %v121
    %v131 = vextract.low.u32 %v130
    %v132 = vextract.high.u32 %v130
    %v133 = vmul.u32 %v126, %v117
    %v134 = vadd.s32 %v129, %v131
    %vm135 = vc.u32 %v129, %v131
    %v136 = vadd.s32 %v132, 1
    %v137 = vsel %vm135, %v136, %v132
    %v138 = vadd.s32 %v133, %v137
    %v139 = vadd.s32 %v138, 536870912
    %v140 = vshrl.u32 %v139, 30
    %v141 = vshll.u32 %v140, 30
    %v142 = vsub.s32 %v138, %v141
    %vm143 = vcmp.lt.s32.totalorder %v142, 0
    %v144 = vsub.s32 0, %v142
    %v145 = vsel %vm143, %v144, %v142
    %v146 = vclz %v145
    %v147 = vsub.s32 %v146, 2
    %vm148 = vcmp.gt.s32.totalorder 0, %v147
    %v149 = vsel %vm148, 0, %v147
    %v150 = vsub.s32 32, %v149
    %v151 = vshll.u32 %v142, %v149
    %v152 = vshrl.u32 %v134, %v150
    %v153 = vor.u32 %v151, %v152
    %v154 = vsub.s32 4294967266, %v149
    %v155 = vadd.s32 %v154, 127
    %v156 = vshll.u32 %v155, 23
    %v157 = vor.u32 4788187, %v156
    %v158 = vand.u32 2147483647, %v157
    %v160 = vcvt.s32.f32 %v153
    %v161 = vmul.f32 %v160, %v158
    %v162 = vxor.u32 %v161, 2147483648
    %v163 = vsel %vm80, %v162, %v161
    %v164 = vsub.s32 4, %v140
    %v165 = vsel %vm80, %v164, %v140
    %v166 = vsel %vm79, %v77, %v163
    %v167 = vsel %vm79, 0, %v165
    %v168 = vcosq.f32.pop %v166
    %v169 = vsinq.f32.pop %v166
    %vm170 = vweird.f32 %v77
    %v171 = vadd.s32 %v167, 3
    %v172 = vand.u32 %v171, 3
    %vm173 = vcmp.lt.s32.totalorder %v172, 2
    %vm174 = vcmp.eq.s32.totalorder %v172, 0
    %v175 = vxor.u32 %v169, 2147483648
    %v176 = vsel %vm174, %v168, %v175
    %vm177 = vcmp.eq.s32.totalorder %v172, 2
    %v178 = vxor.u32 %v168, 2147483648
    %v179 = vsel %vm177, %v178, %v169
    %v180 = vsel %vm173, %v176, %v179
    %v181 = vsel %vm170, nan, %v180
    %v182 = vpack.c.bf16 %v181, %v181
    %v183 = vld [vmem:[#allocation2] sm:$0xff]
    %v184 = vld [vmem:[#allocation2 + $0x8] sm:$0xff]
    %v185 = vld [vmem:[#allocation2 + $0x10] sm:$0xff]
    %v186 = vld [vmem:[#allocation2 + $0x18] sm:$0xff]
    %v187 = vld [vmem:[#allocation2 + $0x20] sm:$0xff]
    %v188 = vld [vmem:[#allocation2 + $0x28] sm:$0xff]
    %v189 = vld [vmem:[#allocation2 + $0x30] sm:$0xff]
    %v190 = vld [vmem:[#allocation2 + $0x38] sm:$0xff]
    %v191 = vld [vmem:[%s4] sm:$0x3]
    %v193 = vlaneseq
    %v194 = vshrl.u32 %v193, 7
    %v195 = vsub.s32 0, %v194
    %v196 = vrot.slane %v191, %v195
    %v197 = vlaneseq
    %v198 = vshrl.u32 %v197, 7
    %v199 = vsub.s32 1, %v198
    %v200 = vrot.slane %v191, %v199
    %v211 = vunpack.c.l.b16 %v183
    %v212 = vunpack.c.h.b16 %v183
    %v213 = vunpack.c.l.b16 %v184
    %v214 = vunpack.c.h.b16 %v184
    %v215 = vunpack.c.l.b16 %v185
    %v216 = vunpack.c.h.b16 %v185
    %v217 = vunpack.c.l.b16 %v186
    %v218 = vunpack.c.h.b16 %v186
    %v219 = vunpack.c.l.b16 %v187
    %v220 = vunpack.c.h.b16 %v187
    %v221 = vunpack.c.l.b16 %v188
    %v222 = vunpack.c.h.b16 %v188
    %v223 = vunpack.c.l.b16 %v189
    %v224 = vunpack.c.h.b16 %v189
    %v225 = vunpack.c.l.b16 %v190
    %v226 = vunpack.c.h.b16 %v190
    %v227 = vpack.c.b16 %v213, %v211
    %v228 = vpack.c.b16 %v214, %v212
    %v229 = vpack.c.b16 %v217, %v215
    %v230 = vpack.c.b16 %v218, %v216
    %v231 = vpack.c.b16 %v221, %v219
    %v232 = vpack.c.b16 %v222, %v220
    %v233 = vpack.c.b16 %v225, %v223
    %v234 = vpack.c.b16 %v226, %v224
    %vm243 = vcmask 523264
    %v245 = vsel %vm243, %v182, 0
    %247 = vmatprep.subr.bf16.mxu0 %v228
    %248 = vmatpush1.bf16.msra.mxu0 %v227
    %249 = vmatprep.subr.bf16.mxu0 %v230
    %250 = vmatpush1.bf16.msra.mxu0 %v229
    %251 = vmatprep.subr.bf16.mxu0 %v232
    %252 = vmatpush1.bf16.msra.mxu0 %v231
    %253 = vmatprep.subr.bf16.mxu0 %v234
    %254 = vmatpush1.bf16.msra.mxu0 %v233
    %255 = vmatprep.subr.bf16.mxu0 0
    %256 = vmatpush1.bf16.msra.mxu0 0
    %257 = vmatprep.subr.bf16.mxu0 0
    %258 = vmatpush1.bf16.msra.mxu0 0
    %259 = vmatprep.subr.bf16.mxu0 0
    %260 = vmatpush1.bf16.msra.mxu0 0
    %261 = vmatprep.subr.bf16.mxu0 0
    %262 = vmatpush1.bf16.msra.mxu0 0
    %263 = vmatprep.subr.bf16.mxu0 0
    %264 = vmatpush1.bf16.msra.mxu0 0
    %265 = vmatprep.subr.bf16.mxu0 0
    %266 = vmatpush1.bf16.msra.mxu0 0
    %267 = vmatprep.subr.bf16.mxu0 0
    %268 = vmatpush1.bf16.msra.mxu0 0
    %269 = vmatprep.subr.bf16.mxu0 0
    %270 = vmatpush1.bf16.msra.mxu0 0
    %271 = vmatprep.subr.bf16.mxu0 0
    %272 = vmatpush1.bf16.msra.mxu0 0
    %273 = vmatprep.subr.bf16.mxu0 0
    %274 = vmatpush1.bf16.msra.mxu0 0
    %275 = vmatprep.subr.bf16.mxu0 0
    %276 = vmatpush1.bf16.msra.mxu0 0
    %277 = vmatprep.subr.bf16.mxu0 0
    %278 = vmatpush1.bf16.msra.mxu0 0
    %279 = vmatprep.mubr.bf16.mxu0 0
    %280 = vmatmul.mubr.bf16.gmra.mrb[0].mxu0 %v245
    %v281 = vpop.f32.mrb[0].mxu0
    %v282 = vadd.f32 %v196, %v281
    %v283 = vpop.f32.mrb[0].mxu0
    %v284 = vadd.f32 %v200, %v283
    %v285 = vpop.f32.mrb[0].mxu0
    %v286 = vpop.f32.mrb[0].mxu0
    %287 = vdwg.mxu0
    %v288 = vmul.f32 %v282, 0.5
    %v289 = vmul.f32 %v284, 0.5
    %v290 = vmul.f32 %v282, 0.70710677
    %v291 = vmul.f32 %v284, 0.70710677
    %v292 = vand.u32 2147483647, %v290
    %v293 = vand.u32 2147483647, %v291
    %v294 = vmul.f32 %v292, 0.3275911
    %v295 = vmul.f32 %v293, 0.3275911
    %v296 = vadd.f32 %v294, 1.0
    %v297 = vadd.f32 %v295, 1.0
    %v298 = vrcp.pop %v296
    %v299 = vmul.f32 1.0, %v298
    %v300 = vrcp.pop %v297
    %v301 = vmul.f32 1.0, %v300
    %v302 = vmul.f32 %v299, 1.0614054
    %v303 = vmul.f32 %v301, 1.0614054
    %v304 = vadd.f32 %v302, -1.4531521
    %v305 = vadd.f32 %v303, -1.4531521
    %v306 = vmul.f32 %v299, %v304
    %v307 = vmul.f32 %v301, %v305
    %v308 = vadd.f32 %v306, 1.4214138
    %v309 = vadd.f32 %v307, 1.4214138
    %v310 = vmul.f32 %v299, %v308
    %v311 = vmul.f32 %v301, %v309
    %v312 = vadd.f32 %v310, -0.28449672
    %v313 = vadd.f32 %v311, -0.28449672
    %v314 = vmul.f32 %v299, %v312
    %v315 = vmul.f32 %v301, %v313
    %v316 = vadd.f32 %v314, 0.2548296
    %v317 = vadd.f32 %v315, 0.2548296
    %v318 = vmul.f32 %v299, %v316
    %v319 = vmul.f32 %v301, %v317
    %v320 = vsub.f32 0.0, %v292
    %v321 = vsub.f32 0.0, %v293
    %v322 = vmul.f32 %v320, %v292
    %v323 = vmul.f32 %v321, %v293
    %v324 = vmul.f32 %v322, 1.442695
    %v325 = vpow.pop %v324
    %v326 = vmul.f32 %v323, 1.442695
    %v327 = vpow.pop %v326
    %v328 = vmul.f32 %v318, %v325
    %v329 = vmul.f32 %v319, %v327
    %v330 = vsub.f32 1.0, %v328
    %v331 = vsub.f32 1.0, %v329
    %vm332 = vcmp.lt.f32.partialorder %v290, 0.0
    %vm333 = vcmp.lt.f32.partialorder %v291, 0.0
    %v334 = vsub.f32 0.0, %v330
    %v335 = vsub.f32 0.0, %v331
    %v336 = vsel %vm332, %v334, %v330
    %v337 = vsel %vm333, %v335, %v331
    %v338 = vadd.f32 %v336, 1.0
    %v339 = vadd.f32 %v337, 1.0
    %v340 = vmul.f32 %v288, %v338
    %v341 = vmul.f32 %v289, %v339
    %v342 = vpack.c.bf16 %v340, %v340
    %v343 = vpack.c.bf16 %v341, %v341
    %v344 = vld [vmem:[#allocation5] sm:$0xff]
    %v345 = vld [vmem:[#allocation5 + $0x8] sm:$0xff]
    %v346 = vld [vmem:[#allocation5 + $0x10] sm:$0xff]
    %v347 = vld [vmem:[#allocation5 + $0x18] sm:$0xff]
    %v348 = vld [vmem:[#allocation5 + $0x20] sm:$0xff]
    %v349 = vld [vmem:[#allocation5 + $0x28] sm:$0xff]
    %v350 = vld [vmem:[#allocation5 + $0x30] sm:$0xff]
    %v351 = vld [vmem:[#allocation5 + $0x38] sm:$0xff]
    %v352 = vld [vmem:[#allocation5 + $0x40] sm:$0xff]
    %v353 = vld [vmem:[#allocation5 + $0x48] sm:$0xff]
    %v354 = vld [vmem:[#allocation5 + $0x50] sm:$0xff]
    %v355 = vld [vmem:[#allocation5 + $0x58] sm:$0xff]
    %v356 = vld [vmem:[#allocation5 + $0x60] sm:$0xff]
    %v357 = vld [vmem:[#allocation5 + $0x68] sm:$0xff]
    %v358 = vld [vmem:[#allocation5 + $0x70] sm:$0xff]
    %v359 = vld [vmem:[#allocation5 + $0x78] sm:$0xff]
    %v360 = vld [vmem:[#allocation5 + $0x80] sm:$0xff]
    %v361 = vld [vmem:[#allocation5 + $0x88] sm:$0xff]
    %v362 = vld [vmem:[#allocation5 + $0x90] sm:$0xff]
    %v363 = vld [vmem:[#allocation5 + $0x98] sm:$0xff]
    %v364 = vld [vmem:[#allocation5 + $0xa0] sm:$0xff]
    %v365 = vld [vmem:[#allocation5 + $0xa8] sm:$0xff]
    %v366 = vld [vmem:[#allocation5 + $0xb0] sm:$0xff]
    %v367 = vld [vmem:[#allocation5 + $0xb8] sm:$0xff]
    %v368 = vld [vmem:[#allocation5 + $0xc0] sm:$0xff]
    %v369 = vld [vmem:[#allocation5 + $0xc8] sm:$0xff]
    %v370 = vld [vmem:[#allocation5 + $0xd0] sm:$0xff]
    %v371 = vld [vmem:[#allocation5 + $0xd8] sm:$0xff]
    %v372 = vld [vmem:[#allocation5 + $0xe0] sm:$0xff]
    %v373 = vld [vmem:[#allocation5 + $0xe8] sm:$0xff]
    %v374 = vld [vmem:[#allocation5 + $0xf0] sm:$0xff]
    %v375 = vld [vmem:[#allocation5 + $0xf8] sm:$0xff]
    %v376 = vld [vmem:[%s6] sm:$0x3]
    %v378 = vlaneseq
    %v379 = vshrl.u32 %v378, 7
    %v380 = vsub.s32 0, %v379
    %v381 = vrot.slane %v376, %v380
    %v382 = vlaneseq
    %v383 = vshrl.u32 %v382, 7
    %v384 = vsub.s32 1, %v383
    %v385 = vrot.slane %v376, %v384
    %v420 = vunpack.c.l.b16 %v344
    %v421 = vunpack.c.h.b16 %v344
    %v422 = vunpack.c.l.b16 %v345
    %v423 = vunpack.c.h.b16 %v345
    %v424 = vunpack.c.l.b16 %v346
    %v425 = vunpack.c.h.b16 %v346
    %v426 = vunpack.c.l.b16 %v347
    %v427 = vunpack.c.h.b16 %v347
    %v428 = vunpack.c.l.b16 %v348
    %v429 = vunpack.c.h.b16 %v348
    %v430 = vunpack.c.l.b16 %v349
    %v431 = vunpack.c.h.b16 %v349
    %v432 = vunpack.c.l.b16 %v350
    %v433 = vunpack.c.h.b16 %v350
    %v434 = vunpack.c.l.b16 %v351
    %v435 = vunpack.c.h.b16 %v351
    %v436 = vunpack.c.l.b16 %v352
    %v437 = vunpack.c.h.b16 %v352
    %v438 = vunpack.c.l.b16 %v353
    %v439 = vunpack.c.h.b16 %v353
    %v440 = vunpack.c.l.b16 %v354
    %v441 = vunpack.c.h.b16 %v354
    %v442 = vunpack.c.l.b16 %v355
    %v443 = vunpack.c.h.b16 %v355
    %v444 = vunpack.c.l.b16 %v356
    %v445 = vunpack.c.h.b16 %v356
    %v446 = vunpack.c.l.b16 %v357
    %v447 = vunpack.c.h.b16 %v357
    %v448 = vunpack.c.l.b16 %v358
    %v449 = vunpack.c.h.b16 %v358
    %v450 = vunpack.c.l.b16 %v359
    %v451 = vunpack.c.h.b16 %v359
    %v452 = vunpack.c.l.b16 %v360
    %v453 = vunpack.c.h.b16 %v360
    %v454 = vunpack.c.l.b16 %v361
    %v455 = vunpack.c.h.b16 %v361
    %v456 = vunpack.c.l.b16 %v362
    %v457 = vunpack.c.h.b16 %v362
    %v458 = vunpack.c.l.b16 %v363
    %v459 = vunpack.c.h.b16 %v363
    %v460 = vunpack.c.l.b16 %v364
    %v461 = vunpack.c.h.b16 %v364
    %v462 = vunpack.c.l.b16 %v365
    %v463 = vunpack.c.h.b16 %v365
    %v464 = vunpack.c.l.b16 %v366
    %v465 = vunpack.c.h.b16 %v366
    %v466 = vunpack.c.l.b16 %v367
    %v467 = vunpack.c.h.b16 %v367
    %v468 = vunpack.c.l.b16 %v368
    %v469 = vunpack.c.h.b16 %v368
    %v470 = vunpack.c.l.b16 %v369
    %v471 = vunpack.c.h.b16 %v369
    %v472 = vunpack.c.l.b16 %v370
    %v473 = vunpack.c.h.b16 %v370
    %v474 = vunpack.c.l.b16 %v371
    %v475 = vunpack.c.h.b16 %v371
    %v476 = vunpack.c.l.b16 %v372
    %v477 = vunpack.c.h.b16 %v372
    %v478 = vunpack.c.l.b16 %v373
    %v479 = vunpack.c.h.b16 %v373
    %v480 = vunpack.c.l.b16 %v374
    %v481 = vunpack.c.h.b16 %v374
    %v482 = vunpack.c.l.b16 %v375
    %v483 = vunpack.c.h.b16 %v375
    %v484 = vpack.c.b16 %v422, %v420
    %v485 = vpack.c.b16 %v423, %v421
    %v486 = vpack.c.b16 %v426, %v424
    %v487 = vpack.c.b16 %v427, %v425
    %v488 = vpack.c.b16 %v430, %v428
    %v489 = vpack.c.b16 %v431, %v429
    %v490 = vpack.c.b16 %v434, %v432
    %v491 = vpack.c.b16 %v435, %v433
    %v492 = vpack.c.b16 %v438, %v436
    %v493 = vpack.c.b16 %v439, %v437
    %v494 = vpack.c.b16 %v442, %v440
    %v495 = vpack.c.b16 %v443, %v441
    %v496 = vpack.c.b16 %v446, %v444
    %v497 = vpack.c.b16 %v447, %v445
    %v498 = vpack.c.b16 %v450, %v448
    %v499 = vpack.c.b16 %v451, %v449
    %v500 = vpack.c.b16 %v454, %v452
    %v501 = vpack.c.b16 %v455, %v453
    %v502 = vpack.c.b16 %v458, %v456
    %v503 = vpack.c.b16 %v459, %v457
    %v504 = vpack.c.b16 %v462, %v460
    %v505 = vpack.c.b16 %v463, %v461
    %v506 = vpack.c.b16 %v466, %v464
    %v507 = vpack.c.b16 %v467, %v465
    %v508 = vpack.c.b16 %v470, %v468
    %v509 = vpack.c.b16 %v471, %v469
    %v510 = vpack.c.b16 %v474, %v472
    %v511 = vpack.c.b16 %v475, %v473
    %v512 = vpack.c.b16 %v478, %v476
    %v513 = vpack.c.b16 %v479, %v477
    %v514 = vpack.c.b16 %v482, %v480
    %v515 = vpack.c.b16 %v483, %v481
    %548 = vmatprep.subr.bf16.mxu0 %v485
    %549 = vmatpush1.bf16.msra.mxu0 %v484
    %550 = vmatprep.subr.bf16.mxu0 %v487
    %551 = vmatpush1.bf16.msra.mxu0 %v486
    %552 = vmatprep.subr.bf16.mxu0 %v489
    %553 = vmatpush1.bf16.msra.mxu0 %v488
    %554 = vmatprep.subr.bf16.mxu0 %v491
    %555 = vmatpush1.bf16.msra.mxu0 %v490
    %556 = vmatprep.subr.bf16.mxu0 %v493
    %557 = vmatpush1.bf16.msra.mxu0 %v492
    %558 = vmatprep.subr.bf16.mxu0 %v495
    %559 = vmatpush1.bf16.msra.mxu0 %v494
    %560 = vmatprep.subr.bf16.mxu0 %v497
    %561 = vmatpush1.bf16.msra.mxu0 %v496
    %562 = vmatprep.subr.bf16.mxu0 %v499
    %563 = vmatpush1.bf16.msra.mxu0 %v498
    %564 = vmatprep.subr.bf16.mxu0 %v501
    %565 = vmatpush1.bf16.msra.mxu0 %v500
    %566 = vmatprep.subr.bf16.mxu0 %v503
    %567 = vmatpush1.bf16.msra.mxu0 %v502
    %568 = vmatprep.subr.bf16.mxu0 %v505
    %569 = vmatpush1.bf16.msra.mxu0 %v504
    %570 = vmatprep.subr.bf16.mxu0 %v507
    %571 = vmatpush1.bf16.msra.mxu0 %v506
    %572 = vmatprep.subr.bf16.mxu0 %v509
    %573 = vmatpush1.bf16.msra.mxu0 %v508
    %574 = vmatprep.subr.bf16.mxu0 %v511
    %575 = vmatpush1.bf16.msra.mxu0 %v510
    %576 = vmatprep.subr.bf16.mxu0 %v513
    %577 = vmatpush1.bf16.msra.mxu0 %v512
    %578 = vmatprep.subr.bf16.mxu0 %v515
    %579 = vmatpush1.bf16.msra.mxu0 %v514
    %580 = vmatprep.mubr.bf16.mxu0 %v343
    %581 = vmatmul.mubr.bf16.gmra.mrb[0].mxu0 %v342
    %v582 = vpop.f32.mrb[0].mxu0
    %v583 = vadd.f32 %v381, %v582
    %v584 = vpop.f32.mrb[0].mxu0
    %v585 = vadd.f32 %v385, %v584
    %v586 = vpop.f32.mrb[0].mxu0
    %v587 = vpop.f32.mrb[0].mxu0
    %588 = vdwg.mxu0
    %589 = vst [vmem:[#allocation7] sm:$0xff] %v583
    %590 = vst [vmem:[#allocation7 + $0x8] sm:$0xff] %v585
    // Predicated region
    $region38: #{tpu_custom_call.1} parent=1 // pred_check
      _
    $region39: #{tpu_custom_call.1} parent=1 // pred_check_branch
      %592 = sbr.rel (0) target = $region41
    $region40: #{tpu_custom_call.1} parent=1 // pred_region
      %s594 = ssub.s32 256, 256
      %595 = vsyncadd [#allocation4], %s594
      %s597 = sshll.u32 [#allocation7], 4
      %s598 = int_to_ptr.vmem [resolvable:$true] %s597
      %600 = dma.vmem_to_hbm [thread:$0]  %s598, 256, %s7, [#allocation4]
    $region41: #{tpu_custom_call.1} parent=1 // pred_fallthru
      _
    // Predicated region
    $region42: #{tpu_custom_call.1} parent=1 // pred_check
      _
    $region43: #{tpu_custom_call.1} parent=1 // pred_check_branch
      %602 = sbr.rel (0) target = $region45
    $region44: #{tpu_custom_call.1} parent=1 // pred_region
      %603 = dma.done [#allocation4], 256
    $region45: #{tpu_custom_call.1} parent=1 // pred_fallthru
      _
    %604 = vsyncpa [#allocation3], 1
    %605 = vsyncpa [#allocation6], 1
    %606 = vsyncpa [#allocation4], 1

</llo_original>
